<compile_context>
chip_gen: v7x
topology: tpu7x:2x2x1
jax: 0.10.0
libtpu: 0.0.40
codegen_flags: <defaults>
</compile_context>

<pallas_src>
import functools

import jax
import jax.numpy as jnp
from jax.experimental import pallas as pl
from jax.experimental.pallas import tpu as pltpu

_LANE = 128
_SUBLANE = 8


def _round_up(n, m):
    return ((n + m - 1) // m) * m


def _mlp_kernel(x_ref, w1_ref, b1_ref, w2_ref, b2_ref, w3_ref, b3_ref, out_ref):
    """Fused 3-layer MLP: bf16 MXU matmuls, f32 accumulate, f32 bias + ReLU."""
    x = x_ref[...]
    # l1 + ReLU
    h1 = jnp.dot(x.astype(w1_ref.dtype), w1_ref[...],
                 preferred_element_type=jnp.float32) + b1_ref[...]
    h1 = jnp.maximum(h1, 0.0)
    # l2 + ReLU
    h2 = jnp.dot(h1.astype(w2_ref.dtype), w2_ref[...],
                 preferred_element_type=jnp.float32) + b2_ref[...]
    h2 = jnp.maximum(h2, 0.0)
    # l3 (no activation, matches PyTorch forward)
    out = jnp.dot(h2.astype(w3_ref.dtype), w3_ref[...],
                  preferred_element_type=jnp.float32) + b3_ref[...]
    out_ref[...] = out.astype(out_ref.dtype)


@functools.partial(jax.jit, static_argnames=("block_m",))
def chatbot_nn_forward(x, params, block_m: int = 512):
    """Fused 3-layer MLP Pallas kernel.

    x: [B, input_size] f32
    params (pre-prepared, see prepare_params):
      w1 [D, Hp] bf16, b1 [1, Hp] f32, w2 [Hp, Hp] bf16, b2 [1, Hp] f32,
      w3 [Hp, C] bf16, b3 [1, C] f32   (Hp = hidden rounded up to 128).
    """
    w1, b1, w2, b2, w3, b3 = (params[k] for k in ("w1", "b1", "w2", "b2", "w3", "b3"))
    B, D = x.shape
    Hp = w1.shape[1]
    C = w3.shape[1]

    # Row-pad x only when B is not a multiple of the f32 sublane count (8).
    Bp = _round_up(B, _SUBLANE)
    if Bp != B:
        x = jnp.pad(x, ((0, Bp - B), (0, 0)))

    # Batch tile: multiple of 8, <= block_m, and <= ceil(B/2) so the grid has
    # at least 2 steps whenever possible (lets "parallel" shard across v7x's
    # two TensorCores; harmless on single-TC v5e/v6e).
    tm = min(block_m, Bp)
    if Bp >= 2 * _SUBLANE:
        tm = min(tm, _round_up(-(-Bp // 2), _SUBLANE))
    grid_m = pl.cdiv(Bp, tm)

    itemsize = x.dtype.itemsize
    weight_bytes = (w1.size * w1.dtype.itemsize + w2.size * w2.dtype.itemsize
                    + w3.size * w3.dtype.itemsize)
    bias_bytes = (b1.size + b2.size + b3.size) * 4
    io_tile_bytes = tm * (D + C) * itemsize
    # Double-buffered worst case + headroom; explicit so the default scoped
    # VMEM limit (16 MiB v5e / 32 MiB v6e, v7x) never gates the tile choice.
    vmem_limit = 2 * (weight_bytes + bias_bytes + io_tile_bytes) + (2 << 20)
    vmem_limit = int(min(max(vmem_limit, 16 << 20), 96 << 20))

    cost = pl.CostEstimate(
        flops=2 * Bp * (D * Hp + Hp * Hp + Hp * C),
        transcendentals=0,
        bytes_accessed=(Bp * D * itemsize + weight_bytes + bias_bytes
                        + Bp * C * itemsize),
    )

    out = pl.pallas_call(
        _mlp_kernel,
        out_shape=jax.ShapeDtypeStruct((Bp, C), jnp.float32),
        grid=(grid_m,),
        in_specs=[
            pl.BlockSpec((tm, D), lambda i: (i, 0)),    # x: streamed over batch
            pl.BlockSpec((D, Hp), lambda i: (0, 0)),    # w1: VMEM-resident
            pl.BlockSpec((1, Hp), lambda i: (0, 0)),    # b1
            pl.BlockSpec((Hp, Hp), lambda i: (0, 0)),   # w2
            pl.BlockSpec((1, Hp), lambda i: (0, 0)),    # b2
            pl.BlockSpec((Hp, C), lambda i: (0, 0)),    # w3
            pl.BlockSpec((1, C), lambda i: (0, 0)),     # b3
        ],
        out_specs=pl.BlockSpec((tm, C), lambda i: (i, 0)),
        compiler_params=pltpu.CompilerParams(
            dimension_semantics=("parallel",),
            vmem_limit_bytes=vmem_limit,
        ),
        cost_estimate=cost,
    )(x, w1, b1, w2, b2, w3, b3)

    return out if Bp == B else out[:B]


def init_params(key, input_size, hidden_layers, num_classes):
    """PyTorch nn.Linear-style init: U(-1/sqrt(fan_in), 1/sqrt(fan_in)), torch
    layout (weight [out, in], bias [out]), full f32."""
    ks = jax.random.split(key, 6)

    def linear(kw, kb, fan_in, fan_out):
        bound = 1.0 / (fan_in ** 0.5)
        w = jax.random.uniform(kw, (fan_out, fan_in), jnp.float32, -bound, bound)
        b = jax.random.uniform(kb, (fan_out,), jnp.float32, -bound, bound)
        return w, b

    w1, b1 = linear(ks[0], ks[1], input_size, hidden_layers)
    w2, b2 = linear(ks[2], ks[3], hidden_layers, hidden_layers)
    w3, b3 = linear(ks[4], ks[5], hidden_layers, num_classes)
    return {"w1": w1, "b1": b1, "w2": w2, "b2": b2, "w3": w3, "b3": b3}


def prepare_params(torch_params, weight_dtype=jnp.bfloat16):
    """One-time layout prep (NOT on the per-forward path):
    transpose to [in, out], zero-pad the hidden dim to a multiple of 128
    (lane-dense VMEM intermediates; zero pads are inert through matmul + bias
    + ReLU), cast weights to bf16 for full-rate MXU; biases stay f32 as [1, out].
    # TODO(synk): fp8 weights + per-output-channel scales on v7x at real H sizes.
    """
    w1, b1 = torch_params["w1"], torch_params["b1"]
    w2, b2 = torch_params["w2"], torch_params["b2"]
    w3, b3 = torch_params["w3"], torch_params["b3"]
    D = w1.shape[1]
    H = w1.shape[0]
    C = w3.shape[0]
    Hp = _round_up(H, _LANE)

    def pad2(a, rows, cols):
        return jnp.pad(a, ((0, rows - a.shape[0]), (0, cols - a.shape[1])))

    return {
        "w1": pad2(w1.T, D, Hp).astype(weight_dtype),
        "b1": pad2(b1[None, :], 1, Hp).astype(jnp.float32),
        "w2": pad2(w2.T, Hp, Hp).astype(weight_dtype),
        "b2": pad2(b2[None, :], 1, Hp).astype(jnp.float32),
        "w3": pad2(w3.T, Hp, C).astype(weight_dtype),
        "b3": b3[None, :].astype(jnp.float32),
    }


def _reference_forward_matched(x, params):
    """Same precision recipe as the kernel (bf16 operands, f32 accumulate)."""
    h1 = jnp.maximum(jnp.dot(x.astype(params["w1"].dtype), params["w1"],
                             preferred_element_type=jnp.float32) + params["b1"], 0.0)
    h2 = jnp.maximum(jnp.dot(h1.astype(params["w2"].dtype), params["w2"],
                             preferred_element_type=jnp.float32) + params["b2"], 0.0)
    return jnp.dot(h2.astype(params["w3"].dtype), params["w3"],
                   preferred_element_type=jnp.float32) + params["b3"]


def _reference_forward_f32(x, tp):
    """True f32 PyTorch-equivalent forward (torch-layout weights)."""
    h1 = jnp.maximum(x @ tp["w1"].T + tp["b1"], 0.0)
    h2 = jnp.maximum(h1 @ tp["w2"].T + tp["b2"], 0.0)
    return h2 @ tp["w3"].T + tp["b3"]


if __name__ == "__main__":
    input_size = 64
    hidden_layers = 32
    num_classes = 16
    batch = 8

    key = jax.random.PRNGKey(0)
    k_x, k_p = jax.random.split(key)

    x = jax.random.normal(k_x, (batch, input_size), jnp.float32)
    torch_params = init_params(k_p, input_size, hidden_layers, num_classes)
    params = jax.block_until_ready(prepare_params(torch_params))  # one-time prep

    out = jax.block_until_ready(chatbot_nn_forward(x, params))
    assert out.shape == (batch, num_classes)

    # Tight check against a reference using the kernel's exact precision recipe.
    ref_matched = _reference_forward_matched(x, params)
    assert jnp.allclose(out, ref_matched, atol=1e-3, rtol=1e-3), \
        "mismatch vs matched-precision JAX reference"

    # Looser check against the true f32 PyTorch-equivalent forward
    # (validates that bf16 weight quantization drift stays small).
    ref_f32 = _reference_forward_f32(x, torch_params)
    assert jnp.allclose(out, ref_f32, atol=5e-2, rtol=5e-2), \
        "mismatch vs f32 PyTorch-equivalent reference"

    print("KERNEL_OK")
</pallas_src>

<mosaic_0001>
module attributes {stable_mosaic.version = 11 : i64} {
  func.func @_mlp_kernel(%arg0: i32, %arg1: memref<8x64xf32, #tpu.memory_space<vmem>>, %arg2: memref<64x128xbf16, #tpu.memory_space<vmem>>, %arg3: memref<1x128xf32, #tpu.memory_space<vmem>>, %arg4: memref<128x128xbf16, #tpu.memory_space<vmem>>, %arg5: memref<1x128xf32, #tpu.memory_space<vmem>>, %arg6: memref<128x16xbf16, #tpu.memory_space<vmem>>, %arg7: memref<1x16xf32, #tpu.memory_space<vmem>>, %arg8: memref<8x16xf32, #tpu.memory_space<vmem>>) attributes {dimension_semantics = [#tpu.dimension_semantics<parallel>], iteration_bounds = array<i64: 1>, scalar_prefetch = 0 : i64, scratch_operands = 0 : i64, tpu.core_type = #tpu.core_type<tc>, window_params = [{transform_indices = @transform_0, window_bounds = array<i64: 8, 64>}, {pipeline_mode = #tpu.pipeline_mode<synchronous>, transform_indices = @transform_1, window_bounds = array<i64: 64, 128>}, {pipeline_mode = #tpu.pipeline_mode<synchronous>, transform_indices = @transform_2, window_bounds = array<i64: 1, 128>}, {pipeline_mode = #tpu.pipeline_mode<synchronous>, transform_indices = @transform_3, window_bounds = array<i64: 128, 128>}, {pipeline_mode = #tpu.pipeline_mode<synchronous>, transform_indices = @transform_4, window_bounds = array<i64: 1, 128>}, {pipeline_mode = #tpu.pipeline_mode<synchronous>, transform_indices = @transform_5, window_bounds = array<i64: 128, 16>}, {pipeline_mode = #tpu.pipeline_mode<synchronous>, transform_indices = @transform_6, window_bounds = array<i64: 1, 16>}, {transform_indices = @transform_7, window_bounds = array<i64: 8, 16>}]} {
    %c0 = arith.constant 0 : index
    %c0_0 = arith.constant 0 : index
    %0 = vector.load %arg1[%c0, %c0_0] : memref<8x64xf32, #tpu.memory_space<vmem>>, vector<8x64xf32>
    %1 = arith.truncf %0 : vector<8x64xf32> to vector<8x64xbf16>
    %c0_1 = arith.constant 0 : index
    %c0_2 = arith.constant 0 : index
    %2 = vector.load %arg2[%c0_1, %c0_2] : memref<64x128xbf16, #tpu.memory_space<vmem>>, vector<64x128xbf16>
    %cst = arith.constant dense<0.000000e+00> : vector<8x128xf32>
    %3 = tpu.matmul %1, %2, %cst {dimension_numbers = #tpu.dot_dimension_numbers<[1], [0], [0], [1], [0, 0, 1, 1], [], []>} : vector<8x64xbf16>, vector<64x128xbf16>, vector<8x128xf32> -> vector<8x128xf32>
    %c0_3 = arith.constant 0 : index
    %c0_4 = arith.constant 0 : index
    %4 = vector.load %arg3[%c0_3, %c0_4] : memref<1x128xf32, #tpu.memory_space<vmem>>, vector<1x128xf32>
    %5 = vector.broadcast %4 : vector<1x128xf32> to vector<8x128xf32>
    %6 = arith.addf %3, %5 : vector<8x128xf32>
    %cst_5 = arith.constant 0.000000e+00 : f32
    %7 = vector.broadcast %cst_5 : f32 to vector<8x128xf32>
    %8 = arith.maximumf %6, %7 : vector<8x128xf32>
    %9 = arith.truncf %8 : vector<8x128xf32> to vector<8x128xbf16>
    %c0_6 = arith.constant 0 : index
    %c0_7 = arith.constant 0 : index
    %10 = vector.load %arg4[%c0_6, %c0_7] : memref<128x128xbf16, #tpu.memory_space<vmem>>, vector<128x128xbf16>
    %cst_8 = arith.constant dense<0.000000e+00> : vector<8x128xf32>
    %11 = tpu.matmul %9, %10, %cst_8 {dimension_numbers = #tpu.dot_dimension_numbers<[1], [0], [0], [1], [0, 0, 1, 1], [], []>} : vector<8x128xbf16>, vector<128x128xbf16>, vector<8x128xf32> -> vector<8x128xf32>
    %c0_9 = arith.constant 0 : index
    %c0_10 = arith.constant 0 : index
    %12 = vector.load %arg5[%c0_9, %c0_10] : memref<1x128xf32, #tpu.memory_space<vmem>>, vector<1x128xf32>
    %13 = vector.broadcast %12 : vector<1x128xf32> to vector<8x128xf32>
    %14 = arith.addf %11, %13 : vector<8x128xf32>
    %cst_11 = arith.constant 0.000000e+00 : f32
    %15 = vector.broadcast %cst_11 : f32 to vector<8x128xf32>
    %16 = arith.maximumf %14, %15 : vector<8x128xf32>
    %17 = arith.truncf %16 : vector<8x128xf32> to vector<8x128xbf16>
    %c0_12 = arith.constant 0 : index
    %c0_13 = arith.constant 0 : index
    %18 = vector.load %arg6[%c0_12, %c0_13] : memref<128x16xbf16, #tpu.memory_space<vmem>>, vector<128x16xbf16>
    %cst_14 = arith.constant dense<0.000000e+00> : vector<8x16xf32>
    %19 = tpu.matmul %17, %18, %cst_14 {dimension_numbers = #tpu.dot_dimension_numbers<[1], [0], [0], [1], [0, 0, 1, 1], [], []>} : vector<8x128xbf16>, vector<128x16xbf16>, vector<8x16xf32> -> vector<8x16xf32>
    %c0_15 = arith.constant 0 : index
    %c0_16 = arith.constant 0 : index
    %20 = vector.load %arg7[%c0_15, %c0_16] : memref<1x16xf32, #tpu.memory_space<vmem>>, vector<1x16xf32>
    %21 = vector.broadcast %20 : vector<1x16xf32> to vector<8x16xf32>
    %22 = arith.addf %19, %21 : vector<8x16xf32>
    %c0_17 = arith.constant 0 : index
    %c0_18 = arith.constant 0 : index
    %23 = vector.load %arg8[%c0_17, %c0_18] : memref<8x16xf32, #tpu.memory_space<vmem>>, vector<8x16xf32>
    tpu.vector_store %arg8[%c0_17, %c0_18], %22 {strides = array<i32>} : memref<8x16xf32, #tpu.memory_space<vmem>>, vector<8x16xf32>,
    return
  }
  func.func @transform_0(%arg0: i32) -> (i32, i32) {
    %c0_i32 = arith.constant 0 : i32
    %c0_i32_0 = arith.constant 0 : i32
    return %arg0, %c0_i32 : i32, i32
  }
  func.func @transform_1(%arg0: i32) -> (i32, i32) {
    %c0_i32 = arith.constant 0 : i32
    %c0_i32_0 = arith.constant 0 : i32
    %c0_i32_1 = arith.constant 0 : i32
    return %c0_i32, %c0_i32_0 : i32, i32
  }
  func.func @transform_2(%arg0: i32) -> (i32, i32) {
    %c0_i32 = arith.constant 0 : i32
    %c0_i32_0 = arith.constant 0 : i32
    %c0_i32_1 = arith.constant 0 : i32
    return %c0_i32, %c0_i32_0 : i32, i32
  }
  func.func @transform_3(%arg0: i32) -> (i32, i32) {
    %c0_i32 = arith.constant 0 : i32
    %c0_i32_0 = arith.constant 0 : i32
    %c0_i32_1 = arith.constant 0 : i32
    return %c0_i32, %c0_i32_0 : i32, i32
  }
  func.func @transform_4(%arg0: i32) -> (i32, i32) {
    %c0_i32 = arith.constant 0 : i32
    %c0_i32_0 = arith.constant 0 : i32
    %c0_i32_1 = arith.constant 0 : i32
    return %c0_i32, %c0_i32_0 : i32, i32
  }
  func.func @transform_5(%arg0: i32) -> (i32, i32) {
    %c0_i32 = arith.constant 0 : i32
    %c0_i32_0 = arith.constant 0 : i32
    %c0_i32_1 = arith.constant 0 : i32
    return %c0_i32, %c0_i32_0 : i32, i32
  }
  func.func @transform_6(%arg0: i32) -> (i32, i32) {
    %c0_i32 = arith.constant 0 : i32
    %c0_i32_0 = arith.constant 0 : i32
    %c0_i32_1 = arith.constant 0 : i32
    return %c0_i32, %c0_i32_0 : i32, i32
  }
  func.func @transform_7(%arg0: i32) -> (i32, i32) {
    %c0_i32 = arith.constant 0 : i32
    %c0_i32_0 = arith.constant 0 : i32
    return %arg0, %c0_i32 : i32, i32
  }
}

</mosaic_0001>

<llo_original>
// kernel: chatbot_nn_forward.1
$region0: #{chatbot_nn_forward.1}
  #allocation0 [shape = 'u32[]', space=smem, size = 0x4, offset = 0x4, fixed_abs, tag = 'smem constant byte address 0x4 - core index']
  #allocation1 [shape = 'u32[144,128]{1,0:T(1,128)}', space=vmem, size = 0x12000, scoped, tag = 'internal scratch']
  %s0 = inlined_call_operand.vmem [shape: f32[8,64], index: 0, kind: input, shape index: {}]
  %s1 = inlined_call_operand.hbm [shape: bf16[64,128], index: 1, kind: input, shape index: {}]
  %s2 = inlined_call_operand.vmem [shape: f32[1,128], index: 2, kind: input, shape index: {}]
  %s3 = inlined_call_operand.vmem [shape: bf16[128,128], index: 3, kind: input, shape index: {}]
  %s4 = inlined_call_operand.vmem [shape: f32[1,128], index: 4, kind: input, shape index: {}]
  %s5 = inlined_call_operand.vmem [shape: bf16[128,16], index: 5, kind: input, shape index: {}]
  %s6 = inlined_call_operand.vmem [shape: f32[1,16], index: 6, kind: input, shape index: {}]
  %s7 = inlined_call_operand.hbm [shape: f32[8,16], index: 7, kind: output, shape index: {}]
  %s8 = sld [smem:[#allocation0]]
  $region42: #{chatbot_nn_forward.1} parent=0
    _
  %s10 = ssub.s32 1, %s8
  %s11 = scalar_select 0, %s10, %s8
  $region1: #{chatbot_nn_forward.1} parent=0
    #allocation2 [shape = 'u8[16384]{0}', space=vmem, size = 0x4000, scoped, tag = 'input window, operand 1, single buffered']
    #allocation3 [shape = 's32[1]{0}', space=sflag, size = 0x4, scoped, tag = 'scoped memory for chatbot_nn_forward.1']
    #allocation4 [shape = 's32[1]{0}', space=sflag, size = 0x4, scoped, tag = 'scoped memory for chatbot_nn_forward.1']
    #allocation5 [shape = 'u8[4096]{0}', space=vmem, size = 0x1000, scoped, tag = 'output window, operand 0, single buffered']
    %12 = vsyncpa [#allocation3], 0
    %13 = vsyncpa [#allocation4], 0
    // Predicated region
    $region2: #{chatbot_nn_forward.1} parent=1 // pred_check
      _
    $region3: #{chatbot_nn_forward.1} parent=1 // pred_check_branch
      %15 = sbr.rel (0) target = $region5
    $region4: #{chatbot_nn_forward.1} parent=1 // pred_region
      _
    $region5: #{chatbot_nn_forward.1} parent=1 // pred_fallthru
      _
    // Predicated region
    $region6: #{chatbot_nn_forward.1} parent=1 // pred_check
      _
    $region7: #{chatbot_nn_forward.1} parent=1 // pred_check_branch
      %17 = sbr.rel (0) target = $region9
    $region8: #{chatbot_nn_forward.1} parent=1 // pred_region
      %s19 = ssub.s32 512, 512
      %20 = vsyncadd [#allocation3], %s19
      %s21 = sshll.u32 [#allocation2], 4
      %s22 = int_to_ptr.vmem [resolvable:$true] %s21
      %27 = dma.hbm_to_vmem [thread:$0]  %s1, 512, %s22, [#allocation3], 64, 64, 4
    $region9: #{chatbot_nn_forward.1} parent=1 // pred_fallthru
      _
    // Predicated region
    $region10: #{chatbot_nn_forward.1} parent=1 // pred_check
      _
    $region11: #{chatbot_nn_forward.1} parent=1 // pred_check_branch
      %29 = sbr.rel (0) target = $region13
    $region12: #{chatbot_nn_forward.1} parent=1 // pred_region
      _
    $region13: #{chatbot_nn_forward.1} parent=1 // pred_fallthru
      _
    // Predicated region
    $region14: #{chatbot_nn_forward.1} parent=1 // pred_check
      _
    $region15: #{chatbot_nn_forward.1} parent=1 // pred_check_branch
      %31 = sbr.rel (0) target = $region17
    $region16: #{chatbot_nn_forward.1} parent=1 // pred_region
      _
    $region17: #{chatbot_nn_forward.1} parent=1 // pred_fallthru
      _
    // Predicated region
    $region18: #{chatbot_nn_forward.1} parent=1 // pred_check
      _
    $region19: #{chatbot_nn_forward.1} parent=1 // pred_check_branch
      %33 = sbr.rel (0) target = $region21
    $region20: #{chatbot_nn_forward.1} parent=1 // pred_region
      _
    $region21: #{chatbot_nn_forward.1} parent=1 // pred_fallthru
      _
    // Predicated region
    $region22: #{chatbot_nn_forward.1} parent=1 // pred_check
      _
    $region23: #{chatbot_nn_forward.1} parent=1 // pred_check_branch
      %35 = sbr.rel (0) target = $region25
    $region24: #{chatbot_nn_forward.1} parent=1 // pred_region
      _
    $region25: #{chatbot_nn_forward.1} parent=1 // pred_fallthru
      _
    // Predicated region
    $region26: #{chatbot_nn_forward.1} parent=1 // pred_check
      _
    $region27: #{chatbot_nn_forward.1} parent=1 // pred_check_branch
      %37 = sbr.rel (0) target = $region29
    $region28: #{chatbot_nn_forward.1} parent=1 // pred_region
      _
    $region29: #{chatbot_nn_forward.1} parent=1 // pred_fallthru
      _
    // Predicated region
    $region30: #{chatbot_nn_forward.1} parent=1 // pred_check
      _
    $region31: #{chatbot_nn_forward.1} parent=1 // pred_check_branch
      %39 = sbr.rel (0) target = $region33
    $region32: #{chatbot_nn_forward.1} parent=1 // pred_region
      %40 = dma.done [#allocation3], 512
    $region33: #{chatbot_nn_forward.1} parent=1 // pred_fallthru
      _
    %v42 = vld [vmem:[%s0] sm:$0xff]
    %v43 = vpack.c.bf16 %v42, %v42
    %v44 = vld [vmem:[#allocation2] sm:$0xf]
    %v45 = vld [vmem:[#allocation2 + $0x4] sm:$0xf]
    %v46 = vld [vmem:[#allocation2 + $0x8] sm:$0xf]
    %v47 = vld [vmem:[#allocation2 + $0xc] sm:$0xf]
    %v48 = vld [vmem:[#allocation2 + $0x10] sm:$0xf]
    %v49 = vld [vmem:[#allocation2 + $0x14] sm:$0xf]
    %v50 = vld [vmem:[#allocation2 + $0x18] sm:$0xf]
    %v51 = vld [vmem:[#allocation2 + $0x1c] sm:$0xf]
    %v52 = vld [vmem:[%s2] sm:$0x1]
    %v54 = vlaneseq
    %v55 = vshrl.u32 %v54, 7
    %v56 = vsub.s32 0, %v55
    %v57 = vrot.slane %v52, %v56
    %v67 = vunpack.c.l.b16 %v44
    %v68 = vunpack.c.l.b16 %v45
    %v69 = vunpack.c.l.b16 %v46
    %v70 = vunpack.c.l.b16 %v47
    %v71 = vunpack.c.l.b16 %v48
    %v72 = vunpack.c.l.b16 %v49
    %v73 = vunpack.c.l.b16 %v50
    %v74 = vunpack.c.l.b16 %v51
    %v75 = vpack.c.b16 %v68, %v67
    %v76 = vpack.c.b16 %v70, %v69
    %v77 = vpack.c.b16 %v72, %v71
    %v78 = vpack.c.b16 %v74, %v73
    %vm83 = vcmask 523264
    %v85 = vsel %vm83, %v43, 0
    %87 = vmatprep.subr.bf16.mxu0 0
    %88 = vmatpush1.bf16.msra.mxu0 %v75
    %89 = vmatprep.subr.bf16.mxu0 0
    %90 = vmatpush1.bf16.msra.mxu0 %v76
    %91 = vmatprep.subr.bf16.mxu0 0
    %92 = vmatpush1.bf16.msra.mxu0 %v77
    %93 = vmatprep.subr.bf16.mxu0 0
    %94 = vmatpush1.bf16.msra.mxu0 %v78
    %95 = vmatprep.subr.bf16.mxu0 0
    %96 = vmatpush1.bf16.msra.mxu0 0
    %97 = vmatprep.subr.bf16.mxu0 0
    %98 = vmatpush1.bf16.msra.mxu0 0
    %99 = vmatprep.subr.bf16.mxu0 0
    %100 = vmatpush1.bf16.msra.mxu0 0
    %101 = vmatprep.subr.bf16.mxu0 0
    %102 = vmatpush1.bf16.msra.mxu0 0
    %103 = vmatprep.subr.bf16.mxu0 0
    %104 = vmatpush1.bf16.msra.mxu0 0
    %105 = vmatprep.subr.bf16.mxu0 0
    %106 = vmatpush1.bf16.msra.mxu0 0
    %107 = vmatprep.subr.bf16.mxu0 0
    %108 = vmatpush1.bf16.msra.mxu0 0
    %109 = vmatprep.subr.bf16.mxu0 0
    %110 = vmatpush1.bf16.msra.mxu0 0
    %111 = vmatprep.subr.bf16.mxu0 0
    %112 = vmatpush1.bf16.msra.mxu0 0
    %113 = vmatprep.subr.bf16.mxu0 0
    %114 = vmatpush1.bf16.msra.mxu0 0
    %115 = vmatprep.subr.bf16.mxu0 0
    %116 = vmatpush1.bf16.msra.mxu0 0
    %117 = vmatprep.subr.bf16.mxu0 0
    %118 = vmatpush1.bf16.msra.mxu0 0
    %119 = vmatprep.mubr.bf16.mxu0 0
    %120 = vmatmul.mubr.bf16.gmra.mrb[0].mxu0 %v85
    %v121 = vpop.f32.mrb[0].mxu0
    %v122 = vadd.f32 %v57, %v121
    %v123 = vpop.f32.mrb[0].mxu0
    %v124 = vpop.f32.mrb[0].mxu0
    %v125 = vpop.f32.mrb[0].mxu0
    %126 = vdwg.mxu0
    %v127 = vmax.f32 %v122, 0.0
    %v128 = vpack.c.bf16 %v127, %v127
    %v129 = vld [vmem:[%s3] sm:$0xf]
    %v130 = vld [vmem:[%s3 + $0x4] sm:$0xf]
    %v131 = vld [vmem:[%s3 + $0x8] sm:$0xf]
    %v132 = vld [vmem:[%s3 + $0xc] sm:$0xf]
    %v133 = vld [vmem:[%s3 + $0x10] sm:$0xf]
    %v134 = vld [vmem:[%s3 + $0x14] sm:$0xf]
    %v135 = vld [vmem:[%s3 + $0x18] sm:$0xf]
    %v136 = vld [vmem:[%s3 + $0x1c] sm:$0xf]
    %v137 = vld [vmem:[%s3 + $0x20] sm:$0xf]
    %v138 = vld [vmem:[%s3 + $0x24] sm:$0xf]
    %v139 = vld [vmem:[%s3 + $0x28] sm:$0xf]
    %v140 = vld [vmem:[%s3 + $0x2c] sm:$0xf]
    %v141 = vld [vmem:[%s3 + $0x30] sm:$0xf]
    %v142 = vld [vmem:[%s3 + $0x34] sm:$0xf]
    %v143 = vld [vmem:[%s3 + $0x38] sm:$0xf]
    %v144 = vld [vmem:[%s3 + $0x3c] sm:$0xf]
    %v145 = vld [vmem:[%s4] sm:$0x1]
    %v147 = vlaneseq
    %v148 = vshrl.u32 %v147, 7
    %v149 = vsub.s32 0, %v148
    %v150 = vrot.slane %v145, %v149
    %v168 = vunpack.c.l.b16 %v129
    %v169 = vunpack.c.l.b16 %v130
    %v170 = vunpack.c.l.b16 %v131
    %v171 = vunpack.c.l.b16 %v132
    %v172 = vunpack.c.l.b16 %v133
    %v173 = vunpack.c.l.b16 %v134
    %v174 = vunpack.c.l.b16 %v135
    %v175 = vunpack.c.l.b16 %v136
    %v176 = vunpack.c.l.b16 %v137
    %v177 = vunpack.c.l.b16 %v138
    %v178 = vunpack.c.l.b16 %v139
    %v179 = vunpack.c.l.b16 %v140
    %v180 = vunpack.c.l.b16 %v141
    %v181 = vunpack.c.l.b16 %v142
    %v182 = vunpack.c.l.b16 %v143
    %v183 = vunpack.c.l.b16 %v144
    %v184 = vpack.c.b16 %v169, %v168
    %v185 = vpack.c.b16 %v171, %v170
    %v186 = vpack.c.b16 %v173, %v172
    %v187 = vpack.c.b16 %v175, %v174
    %v188 = vpack.c.b16 %v177, %v176
    %v189 = vpack.c.b16 %v179, %v178
    %v190 = vpack.c.b16 %v181, %v180
    %v191 = vpack.c.b16 %v183, %v182
    %200 = vmatprep.subr.bf16.mxu0 0
    %201 = vmatpush1.bf16.msra.mxu0 %v184
    %202 = vmatprep.subr.bf16.mxu0 0
    %203 = vmatpush1.bf16.msra.mxu0 %v185
    %204 = vmatprep.subr.bf16.mxu0 0
    %205 = vmatpush1.bf16.msra.mxu0 %v186
    %206 = vmatprep.subr.bf16.mxu0 0
    %207 = vmatpush1.bf16.msra.mxu0 %v187
    %208 = vmatprep.subr.bf16.mxu0 0
    %209 = vmatpush1.bf16.msra.mxu0 %v188
    %210 = vmatprep.subr.bf16.mxu0 0
    %211 = vmatpush1.bf16.msra.mxu0 %v189
    %212 = vmatprep.subr.bf16.mxu0 0
    %213 = vmatpush1.bf16.msra.mxu0 %v190
    %214 = vmatprep.subr.bf16.mxu0 0
    %215 = vmatpush1.bf16.msra.mxu0 %v191
    %216 = vmatprep.subr.bf16.mxu0 0
    %217 = vmatpush1.bf16.msra.mxu0 0
    %218 = vmatprep.subr.bf16.mxu0 0
    %219 = vmatpush1.bf16.msra.mxu0 0
    %220 = vmatprep.subr.bf16.mxu0 0
    %221 = vmatpush1.bf16.msra.mxu0 0
    %222 = vmatprep.subr.bf16.mxu0 0
    %223 = vmatpush1.bf16.msra.mxu0 0
    %224 = vmatprep.subr.bf16.mxu0 0
    %225 = vmatpush1.bf16.msra.mxu0 0
    %226 = vmatprep.subr.bf16.mxu0 0
    %227 = vmatpush1.bf16.msra.mxu0 0
    %228 = vmatprep.subr.bf16.mxu0 0
    %229 = vmatpush1.bf16.msra.mxu0 0
    %230 = vmatprep.subr.bf16.mxu0 0
    %231 = vmatpush1.bf16.msra.mxu0 0
    %232 = vmatprep.mubr.bf16.mxu0 0
    %233 = vmatmul.mubr.bf16.gmra.mrb[0].mxu0 %v128
    %v234 = vpop.f32.mrb[0].mxu0
    %v235 = vadd.f32 %v150, %v234
    %v236 = vpop.f32.mrb[0].mxu0
    %v237 = vpop.f32.mrb[0].mxu0
    %v238 = vpop.f32.mrb[0].mxu0
    %239 = vdwg.mxu0
    %v240 = vmax.f32 %v235, 0.0
    %v241 = vpack.c.bf16 %v240, %v240
    %v242 = vld [vmem:[%s5] sm:$0xf]
    %v243 = vld [vmem:[%s5 + $0x4] sm:$0xf]
    %v244 = vld [vmem:[%s5 + $0x8] sm:$0xf]
    %v245 = vld [vmem:[%s5 + $0xc] sm:$0xf]
    %v246 = vld [vmem:[%s5 + $0x10] sm:$0xf]
    %v247 = vld [vmem:[%s5 + $0x14] sm:$0xf]
    %v248 = vld [vmem:[%s5 + $0x18] sm:$0xf]
    %v249 = vld [vmem:[%s5 + $0x1c] sm:$0xf]
    %v250 = vld [vmem:[%s5 + $0x20] sm:$0xf]
    %v251 = vld [vmem:[%s5 + $0x24] sm:$0xf]
    %v252 = vld [vmem:[%s5 + $0x28] sm:$0xf]
    %v253 = vld [vmem:[%s5 + $0x2c] sm:$0xf]
    %v254 = vld [vmem:[%s5 + $0x30] sm:$0xf]
    %v255 = vld [vmem:[%s5 + $0x34] sm:$0xf]
    %v256 = vld [vmem:[%s5 + $0x38] sm:$0xf]
    %v257 = vld [vmem:[%s5 + $0x3c] sm:$0xf]
    %v258 = vld [vmem:[%s6] sm:$0x1]
    %v260 = vlaneseq
    %v261 = vshrl.u32 %v260, 7
    %v262 = vsub.s32 0, %v261
    %v263 = vrot.slane %v258, %v262
    %v281 = vunpack.c.l.b16 %v242
    %v282 = vunpack.c.l.b16 %v243
    %v283 = vunpack.c.l.b16 %v244
    %v284 = vunpack.c.l.b16 %v245
    %v285 = vunpack.c.l.b16 %v246
    %v286 = vunpack.c.l.b16 %v247
    %v287 = vunpack.c.l.b16 %v248
    %v288 = vunpack.c.l.b16 %v249
    %v289 = vunpack.c.l.b16 %v250
    %v290 = vunpack.c.l.b16 %v251
    %v291 = vunpack.c.l.b16 %v252
    %v292 = vunpack.c.l.b16 %v253
    %v293 = vunpack.c.l.b16 %v254
    %v294 = vunpack.c.l.b16 %v255
    %v295 = vunpack.c.l.b16 %v256
    %v296 = vunpack.c.l.b16 %v257
    %v297 = vpack.c.b16 %v282, %v281
    %v298 = vpack.c.b16 %v284, %v283
    %v299 = vpack.c.b16 %v286, %v285
    %v300 = vpack.c.b16 %v288, %v287
    %v301 = vpack.c.b16 %v290, %v289
    %v302 = vpack.c.b16 %v292, %v291
    %v303 = vpack.c.b16 %v294, %v293
    %v304 = vpack.c.b16 %v296, %v295
    %313 = vmatprep.subr.bf16.mxu0 0
    %314 = vmatpush1.bf16.msra.mxu0 %v297
    %315 = vmatprep.subr.bf16.mxu0 0
    %316 = vmatpush1.bf16.msra.mxu0 %v298
    %317 = vmatprep.subr.bf16.mxu0 0
    %318 = vmatpush1.bf16.msra.mxu0 %v299
    %319 = vmatprep.subr.bf16.mxu0 0
    %320 = vmatpush1.bf16.msra.mxu0 %v300
    %321 = vmatprep.subr.bf16.mxu0 0
    %322 = vmatpush1.bf16.msra.mxu0 %v301
    %323 = vmatprep.subr.bf16.mxu0 0
    %324 = vmatpush1.bf16.msra.mxu0 %v302
    %325 = vmatprep.subr.bf16.mxu0 0
    %326 = vmatpush1.bf16.msra.mxu0 %v303
    %327 = vmatprep.subr.bf16.mxu0 0
    %328 = vmatpush1.bf16.msra.mxu0 %v304
    %329 = vmatprep.subr.bf16.mxu0 0
    %330 = vmatpush1.bf16.msra.mxu0 0
    %331 = vmatprep.subr.bf16.mxu0 0
    %332 = vmatpush1.bf16.msra.mxu0 0
    %333 = vmatprep.subr.bf16.mxu0 0
    %334 = vmatpush1.bf16.msra.mxu0 0
    %335 = vmatprep.subr.bf16.mxu0 0
    %336 = vmatpush1.bf16.msra.mxu0 0
    %337 = vmatprep.subr.bf16.mxu0 0
    %338 = vmatpush1.bf16.msra.mxu0 0
    %339 = vmatprep.subr.bf16.mxu0 0
    %340 = vmatpush1.bf16.msra.mxu0 0
    %341 = vmatprep.subr.bf16.mxu0 0
    %342 = vmatpush1.bf16.msra.mxu0 0
    %343 = vmatprep.subr.bf16.mxu0 0
    %344 = vmatpush1.bf16.msra.mxu0 0
    %345 = vmatprep.mubr.bf16.mxu0 0
    %346 = vmatmul.mubr.bf16.gmra.mrb[0].mxu0 %v241
    %v347 = vpop.f32.mrb[0].mxu0
    %v348 = vadd.f32 %v263, %v347
    %v349 = vpop.f32.mrb[0].mxu0
    %v350 = vpop.f32.mrb[0].mxu0
    %v351 = vpop.f32.mrb[0].mxu0
    %352 = vdwg.mxu0
    %vm353 = vcmask 130048
    %354 = vst.msk [vmem:[#allocation5] sm:$0xff] %vm353, %v348
    // Predicated region
    $region34: #{chatbot_nn_forward.1} parent=1 // pred_check
      _
    $region35: #{chatbot_nn_forward.1} parent=1 // pred_check_branch
      %356 = sbr.rel (0) target = $region37
    $region36: #{chatbot_nn_forward.1} parent=1 // pred_region
      %s358 = ssub.s32 128, 128
      %359 = vsyncadd [#allocation4], %s358
      %s361 = sshll.u32 [#allocation5], 4
      %s362 = int_to_ptr.vmem [resolvable:$true] %s361
      %364 = dma.vmem_to_hbm [thread:$0]  %s362, 128, %s7, [#allocation4]
    $region37: #{chatbot_nn_forward.1} parent=1 // pred_fallthru
      _
    // Predicated region
    $region38: #{chatbot_nn_forward.1} parent=1 // pred_check
      _
    $region39: #{chatbot_nn_forward.1} parent=1 // pred_check_branch
      %366 = sbr.rel (0) target = $region41
    $region40: #{chatbot_nn_forward.1} parent=1 // pred_region
      %367 = dma.done [#allocation4], 128
    $region41: #{chatbot_nn_forward.1} parent=1 // pred_fallthru
      _
    %368 = vsyncpa [#allocation3], 1
    %369 = vsyncpa [#allocation4], 1

</llo_original>
